<compile_context>
chip_gen: v6e
topology: v6e:2x2x1
jax: 0.10.0
libtpu: 0.0.40
codegen_flags: <defaults>
</compile_context>

<pallas_src>
import functools

import jax
import jax.numpy as jnp
from jax.experimental import pallas as pl
from jax.experimental.pallas import tpu as pltpu

LANE = 128
SUBLANE = 8


# ----------------------------------------------------------------------------- helpers
def _round_up(x, m):
    return (x + m - 1) // m * m


def _pad_axis(x, axis, new_size):
    pad = new_size - x.shape[axis]
    if pad <= 0:
        return x
    widths = [(0, 0)] * x.ndim
    widths[axis] = (0, pad)
    return jnp.pad(x, widths)


def normalized_adjacency(adj):
    """DGL GraphConv norm='both': D^-1/2 A D^-1/2 (symmetric graph)."""
    deg = jnp.sum(adj, axis=1)
    d_inv_sqrt = jnp.where(deg > 0, 1.0 / jnp.sqrt(deg), 0.0)
    return adj * d_inv_sqrt[:, None] * d_inv_sqrt[None, :]


# ------------------------------------------------------------------- fused 2-layer kernel
def _fused_gcn_kernel(a_ref, h_ref, w1_ref, b1_ref, w2_ref, b2_ref, o_ref, *,
                      agg_dtype, dims):
    # dims = (f_in, f_hid_p, f_out_p): actual operand widths inside the kernel,
    # used only for the *static* association choice.
    f_in, f_hid_p, f_out_p = dims
    a_agg = a_ref[...].astype(agg_dtype)   # Ahat, already agg_dtype (no-op cast then)

    # ---- Layer 1: relu(Ahat @ H @ W1 + b1); run the N^2 matmul over the smaller dim.
    if f_in <= f_hid_p:
        ah = jnp.dot(a_agg, h_ref[...].astype(agg_dtype),
                     preferred_element_type=jnp.float32)
        h1 = jnp.dot(ah, w1_ref[...], preferred_element_type=jnp.float32)
    else:
        hw = jnp.dot(h_ref[...], w1_ref[...], preferred_element_type=jnp.float32)
        h1 = jnp.dot(a_agg, hw.astype(agg_dtype), preferred_element_type=jnp.float32)
    h1 = jnp.maximum(h1 + b1_ref[...], 0.0)

    # Dropout(0.5) between layers: identity in eval/inference mode.
    # TODO(synk): training-mode stochastic dropout not implemented.

    # ---- Layer 2: Ahat @ H1 @ W2 + b2 (no activation).
    if f_hid_p <= f_out_p:
        ah1 = jnp.dot(a_agg, h1.astype(agg_dtype), preferred_element_type=jnp.float32)
        out = jnp.dot(ah1, w2_ref[...], preferred_element_type=jnp.float32)
    else:
        hw2 = jnp.dot(h1, w2_ref[...], preferred_element_type=jnp.float32)
        out = jnp.dot(a_agg, hw2.astype(agg_dtype), preferred_element_type=jnp.float32)

    o_ref[...] = (out + b2_ref[...]).astype(o_ref.dtype)


def gcn_forward_fused(a_hat, features, params, *, agg_dtype=jnp.float32):
    """Whole-graph-in-VMEM fused forward (both GraphConv layers in one pallas_call)."""
    (w1, b1), (w2, b2) = params
    n, f_in = features.shape
    f_hid = w1.shape[1]
    f_out = w2.shape[1]

    n_p = _round_up(n, SUBLANE)
    f_hid_p = _round_up(f_hid, LANE)   # lane-dense hidden dim
    f_out_p = _round_up(f_out, LANE)   # lane-dense (unmasked) output stores

    # Zero padding is exact: padded W/b columns give zero (or relu(0)=0) features,
    # padded Ahat rows/cols are zero, padded output rows/cols are sliced off.
    a_p = _pad_axis(_pad_axis(a_hat, 0, n_p), 1, n_p).astype(agg_dtype)
    h_p = _pad_axis(features, 0, n_p)
    w1_p = _pad_axis(w1, 1, f_hid_p)
    b1_p = _pad_axis(b1.reshape(1, -1), 1, f_hid_p)
    w2_p = _pad_axis(_pad_axis(w2, 0, f_hid_p), 1, f_out_p)
    b2_p = _pad_axis(b2.reshape(1, -1), 1, f_out_p)

    flops = (2 * n_p * n_p * min(f_in, f_hid_p) + 2 * n_p * f_in * f_hid_p
             + 2 * n_p * n_p * min(f_hid_p, f_out_p) + 2 * n_p * f_hid_p * f_out_p)
    bytes_accessed = int(
        a_p.size * a_p.dtype.itemsize
        + 4 * (h_p.size + w1_p.size + b1_p.size + w2_p.size + b2_p.size + n_p * f_out_p))

    kernel = functools.partial(_fused_gcn_kernel, agg_dtype=agg_dtype,
                               dims=(f_in, f_hid_p, f_out_p))
    out_p = pl.pallas_call(
        kernel,
        out_shape=jax.ShapeDtypeStruct((n_p, f_out_p), jnp.float32),
        in_specs=[pl.BlockSpec(memory_space=pltpu.VMEM)] * 6,
        out_specs=pl.BlockSpec(memory_space=pltpu.VMEM),
        cost_estimate=pl.CostEstimate(flops=flops, transcendentals=0,
                                      bytes_accessed=bytes_accessed),
    )(a_p, h_p, w1_p, b1_p, w2_p, b2_p)
    return out_p[:n, :f_out]


# ------------------------------------------------------------- row-tiled (scalable) path
def _row_matmul_kernel(*refs, has_bias, apply_relu):
    if has_bias:
        x_ref, w_ref, b_ref, o_ref = refs
    else:
        x_ref, w_ref, o_ref = refs
    out = jnp.dot(x_ref[...], w_ref[...], preferred_element_type=jnp.float32)
    if has_bias:
        out = out + b_ref[...]
    if apply_relu:
        out = jnp.maximum(out, 0.0)
    o_ref[...] = out.astype(o_ref.dtype)


def tiled_row_matmul(lhs, rhs, bias=None, *, apply_relu=False, tm):
    """out = relu?(lhs @ rhs + bias): lhs row-tiled (double-buffered), rhs/bias resident."""
    n_rows, k = lhs.shape
    k2, f = rhs.shape
    assert k == k2 and n_rows % tm == 0
    has_bias = bias is not None

    in_specs = [pl.BlockSpec((tm, k), lambda i: (i, 0)),     # lhs row tile
                pl.BlockSpec((k, f), lambda i: (0, 0))]      # rhs: resident
    args = [lhs, rhs]
    if has_bias:
        in_specs.append(pl.BlockSpec((1, f), lambda i: (0, 0)))  # bias: resident
        args.append(bias)

    flops = 2 * n_rows * k * f
    bytes_accessed = int(lhs.size * lhs.dtype.itemsize + rhs.size * rhs.dtype.itemsize
                         + (bias.size * bias.dtype.itemsize if has_bias else 0)
                         + n_rows * f * 4)

    kernel = functools.partial(_row_matmul_kernel, has_bias=has_bias,
                               apply_relu=apply_relu)
    return pl.pallas_call(
        kernel,
        out_shape=jax.ShapeDtypeStruct((n_rows, f), jnp.float32),
        grid=(n_rows // tm,),
        in_specs=in_specs,
        out_specs=pl.BlockSpec((tm, f), lambda i: (i, 0)),   # lane-dense stores
        compiler_params=pltpu.CompilerParams(
            dimension_semantics=("parallel",)),
        cost_estimate=pl.CostEstimate(flops=flops, transcendentals=0,
                                      bytes_accessed=bytes_accessed),
    )(*args)


def gcn_layer_tiled(a_p, h_p, w, b, *, apply_relu, tm, agg_dtype):
    """One GraphConv layer, row-tiled.  The dense feature transform H@W (or (A@H)@W) is
    computed exactly once; the N^2 aggregation matmul runs over the smaller feature dim."""
    f_in = w.shape[0]
    f_out = w.shape[1]
    f_in_p = _round_up(f_in, LANE)
    f_out_p = _round_up(f_out, LANE)
    w_p = _pad_axis(w, 1, f_out_p)
    b_row = _pad_axis(b.reshape(1, -1), 1, f_out_p)

    aggregate_first = (f_in_p < f_out_p) or (f_in_p == f_out_p and f_in <= f_out)
    if aggregate_first:
        # (Ahat @ H) @ W + b : N^2 matmul runs over the (padded) input width.
        x = _pad_axis(h_p, 1, f_in_p).astype(agg_dtype)
        ah = tiled_row_matmul(a_p, x, None, apply_relu=False, tm=tm)
        w_pp = _pad_axis(w_p, 0, f_in_p)
        out = tiled_row_matmul(ah, w_pp, b_row, apply_relu=apply_relu, tm=tm)
    else:
        # Ahat @ (H @ W) + b : H@W computed ONCE, N^2 matmul runs over the output width.
        hw = tiled_row_matmul(h_p, w_p, None, apply_relu=False, tm=tm)
        out = tiled_row_matmul(a_p, hw.astype(agg_dtype), b_row,
                               apply_relu=apply_relu, tm=tm)
    return out


def _choose_tm(n_p, f_res_p, a_itemsize, budget_bytes):
    """Largest row tile whose double-buffered A tile + resident operand + output tile fit
    the VMEM budget (default 24 MiB: headroom under v7x's 32 MiB scoped limit)."""
    resident = 2 * n_p * f_res_p * 4
    for cand in (1024, 512, 256, 128, 64, 32, 16, 8):
        if cand > n_p:
            continue
        per_step = 2 * cand * n_p * a_itemsize + 2 * cand * f_res_p * 4
        if resident + per_step <= budget_bytes:
            return cand
    return SUBLANE


def gcn_forward_tiled(a_hat, features, params, *, tm=None, agg_dtype=jnp.float32,
                      vmem_budget_bytes=24 * 1024 * 1024):
    """Row-tiled forward for graphs too large for whole-graph VMEM residency."""
    (w1, b1), (w2, b2) = params
    n, f_in = features.shape
    f_hid = w1.shape[1]
    f_out = w2.shape[1]
    f_in_p = _round_up(f_in, LANE)
    f_hid_p = _round_up(f_hid, LANE)
    f_out_p = _round_up(f_out, LANE)

    a_itemsize = jnp.dtype(agg_dtype).itemsize
    n_p = _round_up(n, SUBLANE)
    if tm is None:
        f_res = max(min(f_in_p, f_hid_p), min(f_hid_p, f_out_p))
        tm = _choose_tm(n_p, f_res, a_itemsize, vmem_budget_bytes)
    n_p = _round_up(n_p, tm)

    a_p = _pad_axis(_pad_axis(a_hat, 0, n_p), 1, n_p).astype(agg_dtype)
    h_p = _pad_axis(features, 0, n_p)

    h1 = gcn_layer_tiled(a_p, h_p, w1, b1, apply_relu=True, tm=tm, agg_dtype=agg_dtype)
    # Dropout(0.5): identity in eval mode.
    w2_rp = _pad_axis(w2, 0, h1.shape[1])   # match the lane-padded hidden width (exact)
    out = gcn_layer_tiled(a_p, h1, w2_rp, b2, apply_relu=False, tm=tm,
                          agg_dtype=agg_dtype)
    return out[:n, :f_out]


# ----------------------------------------------------------------------------- dispatcher
def gcn_forward(a_hat, features, params, *, agg_dtype=jnp.float32,
                fused_vmem_budget_bytes=24 * 1024 * 1024):
    """Pick fused (whole graph resident in VMEM) or row-tiled path by footprint."""
    (w1, _), (w2, _) = params
    n, f_in = features.shape
    f_hid_p = _round_up(w1.shape[1], LANE)
    f_out_p = _round_up(w2.shape[1], LANE)
    n_p = _round_up(n, SUBLANE)
    a_itemsize = jnp.dtype(agg_dtype).itemsize
    footprint = (n_p * n_p * a_itemsize
                 + 4 * (n_p * f_in + n_p * f_hid_p + n_p * f_out_p
                        + f_in * f_hid_p + f_hid_p * f_out_p))
    if footprint <= fused_vmem_budget_bytes:
        return gcn_forward_fused(a_hat, features, params, agg_dtype=agg_dtype)
    return gcn_forward_tiled(a_hat, features, params, agg_dtype=agg_dtype)


# ----------------------------------------------------------------------------- demo/check
if __name__ == "__main__":
    key = jax.random.PRNGKey(0)
    k_feat, k_adj, k_w1, k_b1, k_w2, k_b2 = jax.random.split(key, 6)

    # Small shapes: N=16 nodes, in_size=16, hid_size=32, out_size=8
    N, in_size, hid_size, out_size = 16, 16, 32, 8

    features = jax.random.normal(k_feat, (N, in_size), dtype=jnp.float32)

    # Random symmetric graph with self-loops (degree >= 1, as DGL norm='both' requires).
    rand = jax.random.uniform(k_adj, (N, N))
    adj = (rand < 0.3).astype(jnp.float32)
    adj = jnp.maximum(adj, adj.T)
    adj = jnp.maximum(adj, jnp.eye(N, dtype=jnp.float32))
    a_hat = normalized_adjacency(adj)

    def glorot(k, shape):
        fan_in, fan_out = shape
        limit = jnp.sqrt(6.0 / (fan_in + fan_out))
        return jax.random.uniform(k, shape, jnp.float32, -limit, limit)

    w1 = glorot(k_w1, (in_size, hid_size))
    b1 = 0.1 * jax.random.normal(k_b1, (hid_size,), dtype=jnp.float32)
    w2 = glorot(k_w2, (hid_size, out_size))
    b2 = 0.1 * jax.random.normal(k_b2, (out_size,), dtype=jnp.float32)
    params = ((w1, b1), (w2, b2))

    # Plain-JAX reference (same math, f32).
    ref = jnp.maximum(a_hat @ features @ w1 + b1, 0.0)
    ref = a_hat @ ref @ w2 + b2

    # 1) Fused single-kernel forward, f32 everywhere (exact check).
    out_fused = jax.block_until_ready(gcn_forward_fused(a_hat, features, params))
    assert out_fused.shape == (N, out_size)
    assert jnp.allclose(out_fused, ref, atol=2e-4, rtol=2e-4), "fused f32 mismatch"

    # 2) Fused forward, bf16 aggregation matmuls (v6e/v7x MXU fast path), f32 accumulation.
    out_bf16 = jax.block_until_ready(
        gcn_forward_fused(a_hat, features, params, agg_dtype=jnp.bfloat16))
    assert jnp.allclose(out_bf16, ref, atol=5e-2, rtol=5e-2), "fused bf16 mismatch"

    # 3) Row-tiled gridded path (scalable design); tm=8 -> grid of 2 row tiles per call.
    out_tiled = jax.block_until_ready(gcn_forward_tiled(a_hat, features, params, tm=8))
    assert jnp.allclose(out_tiled, ref, atol=2e-4, rtol=2e-4), "tiled f32 mismatch"

    out_tiled_bf16 = jax.block_until_ready(
        gcn_forward_tiled(a_hat, features, params, tm=8, agg_dtype=jnp.bfloat16))
    assert jnp.allclose(out_tiled_bf16, ref, atol=5e-2, rtol=5e-2), "tiled bf16 mismatch"

    # 4) Dispatcher picks the fused path for this small graph.
    out_auto = jax.block_until_ready(gcn_forward(a_hat, features, params))
    assert jnp.allclose(out_auto, ref, atol=2e-4, rtol=2e-4), "dispatch mismatch"

    print("KERNEL_OK")
</pallas_src>

<mosaic_0001>
module attributes {stable_mosaic.version = 11 : i64} {
  func.func @_fused_gcn_kernel(%arg0: memref<16x16xf32, #tpu.memory_space<vmem>>, %arg1: memref<16x16xf32, #tpu.memory_space<vmem>>, %arg2: memref<16x128xf32, #tpu.memory_space<vmem>>, %arg3: memref<1x128xf32, #tpu.memory_space<vmem>>, %arg4: memref<128x128xf32, #tpu.memory_space<vmem>>, %arg5: memref<1x128xf32, #tpu.memory_space<vmem>>, %arg6: memref<16x128xf32, #tpu.memory_space<vmem>>) attributes {dimension_semantics = [], scalar_prefetch = 0 : i64, scratch_operands = 0 : i64, tpu.core_type = #tpu.core_type<tc>} {
    %c0 = arith.constant 0 : index
    %c0_0 = arith.constant 0 : index
    %0 = vector.load %arg0[%c0, %c0_0] : memref<16x16xf32, #tpu.memory_space<vmem>>, vector<16x16xf32>
    %c0_1 = arith.constant 0 : index
    %c0_2 = arith.constant 0 : index
    %1 = vector.load %arg1[%c0_1, %c0_2] : memref<16x16xf32, #tpu.memory_space<vmem>>, vector<16x16xf32>
    %cst = arith.constant dense<0.000000e+00> : vector<16x16xf32>
    %2 = tpu.matmul %0, %1, %cst {dimension_numbers = #tpu.dot_dimension_numbers<[1], [0], [0], [1], [0, 0, 1, 1], [], []>} : vector<16x16xf32>, vector<16x16xf32>, vector<16x16xf32> -> vector<16x16xf32>
    %c0_3 = arith.constant 0 : index
    %c0_4 = arith.constant 0 : index
    %3 = vector.load %arg2[%c0_3, %c0_4] : memref<16x128xf32, #tpu.memory_space<vmem>>, vector<16x128xf32>
    %cst_5 = arith.constant dense<0.000000e+00> : vector<16x128xf32>
    %4 = tpu.matmul %2, %3, %cst_5 {dimension_numbers = #tpu.dot_dimension_numbers<[1], [0], [0], [1], [0, 0, 1, 1], [], []>} : vector<16x16xf32>, vector<16x128xf32>, vector<16x128xf32> -> vector<16x128xf32>
    %c0_6 = arith.constant 0 : index
    %c0_7 = arith.constant 0 : index
    %5 = vector.load %arg3[%c0_6, %c0_7] : memref<1x128xf32, #tpu.memory_space<vmem>>, vector<1x128xf32>
    %6 = vector.broadcast %5 : vector<1x128xf32> to vector<16x128xf32>
    %7 = arith.addf %4, %6 : vector<16x128xf32>
    %cst_8 = arith.constant 0.000000e+00 : f32
    %8 = vector.broadcast %cst_8 : f32 to vector<16x128xf32>
    %9 = arith.maximumf %7, %8 : vector<16x128xf32>
    %cst_9 = arith.constant dense<0.000000e+00> : vector<16x128xf32>
    %10 = tpu.matmul %0, %9, %cst_9 {dimension_numbers = #tpu.dot_dimension_numbers<[1], [0], [0], [1], [0, 0, 1, 1], [], []>} : vector<16x16xf32>, vector<16x128xf32>, vector<16x128xf32> -> vector<16x128xf32>
    %c0_10 = arith.constant 0 : index
    %c0_11 = arith.constant 0 : index
    %11 = vector.load %arg4[%c0_10, %c0_11] : memref<128x128xf32, #tpu.memory_space<vmem>>, vector<128x128xf32>
    %cst_12 = arith.constant dense<0.000000e+00> : vector<16x128xf32>
    %12 = tpu.matmul %10, %11, %cst_12 {dimension_numbers = #tpu.dot_dimension_numbers<[1], [0], [0], [1], [0, 0, 1, 1], [], []>} : vector<16x128xf32>, vector<128x128xf32>, vector<16x128xf32> -> vector<16x128xf32>
    %c0_13 = arith.constant 0 : index
    %c0_14 = arith.constant 0 : index
    %13 = vector.load %arg5[%c0_13, %c0_14] : memref<1x128xf32, #tpu.memory_space<vmem>>, vector<1x128xf32>
    %14 = vector.broadcast %13 : vector<1x128xf32> to vector<16x128xf32>
    %15 = arith.addf %12, %14 : vector<16x128xf32>
    %c0_15 = arith.constant 0 : index
    %c0_16 = arith.constant 0 : index
    %16 = vector.load %arg6[%c0_15, %c0_16] : memref<16x128xf32, #tpu.memory_space<vmem>>, vector<16x128xf32>
    tpu.vector_store %arg6[%c0_15, %c0_16], %15 {strides = array<i32>} : memref<16x128xf32, #tpu.memory_space<vmem>>, vector<16x128xf32>,
    return
  }
}

</mosaic_0001>

<llo_original>
// kernel: tpu_custom_call.1
$region0: #{tpu_custom_call.1}
  #allocation0 [shape = 'u32[]', space=smem, size = 0x4, offset = 0x4, fixed_abs, tag = 'smem constant byte address 0x4 - core index']
  #allocation1 [shape = 'u32[144,128]{1,0:T(1,128)}', space=vmem, size = 0x12000, scoped, tag = 'internal scratch']
  %s0 = inlined_call_operand.hbm [shape: f32[16,16], index: 0, kind: input, shape index: {}]
  %s1 = inlined_call_operand.hbm [shape: f32[16,16], index: 1, kind: input, shape index: {}]
  %s2 = inlined_call_operand.hbm [shape: f32[16,128], index: 2, kind: input, shape index: {}]
  %s3 = inlined_call_operand.vmem [shape: f32[1,128], index: 3, kind: input, shape index: {}]
  %s4 = inlined_call_operand.hbm [shape: f32[128,128], index: 4, kind: input, shape index: {}]
  %s5 = inlined_call_operand.vmem [shape: f32[1,128], index: 5, kind: input, shape index: {}]
  %s6 = inlined_call_operand.hbm [shape: f32[16,128], index: 6, kind: output, shape index: {}]
  %s7 = sld [smem:[#allocation0]]
  $region50: #{tpu_custom_call.1} parent=0
    _
  %s9 = ssub.s32 1, %s7
  %s10 = scalar_select 0, %s9, %s7
  $region1: #{tpu_custom_call.1} parent=0
    #allocation2 [shape = 'u8[8192]{0}', space=vmem, size = 0x2000, scoped, tag = 'input window, operand 0, single buffered']
    #allocation3 [shape = 's32[1]{0}', space=sflag, size = 0x4, scoped, tag = 'scoped memory for tpu_custom_call.1']
    #allocation4 [shape = 's32[1]{0}', space=sflag, size = 0x4, scoped, tag = 'scoped memory for tpu_custom_call.1']
    #allocation5 [shape = 'u8[8192]{0}', space=vmem, size = 0x2000, scoped, tag = 'input window, operand 1, single buffered']
    #allocation6 [shape = 's32[1]{0}', space=sflag, size = 0x4, scoped, tag = 'scoped memory for tpu_custom_call.1']
    #allocation7 [shape = 'u8[8192]{0}', space=vmem, size = 0x2000, scoped, tag = 'input window, operand 2, single buffered']
    #allocation8 [shape = 'u8[65536]{0}', space=vmem, size = 0x10000, scoped, tag = 'input window, operand 4, single buffered']
    #allocation9 [shape = 's32[1]{0}', space=sflag, size = 0x4, scoped, tag = 'scoped memory for tpu_custom_call.1']
    #allocation10 [shape = 'u8[8192]{0}', space=vmem, size = 0x2000, scoped, tag = 'output window, operand 0, single buffered']
    %11 = vsyncpa [#allocation3], 0
    %12 = vsyncpa [#allocation6], 0
    %13 = vsyncpa [#allocation9], 0
    %14 = vsyncpa [#allocation4], 0
    // Predicated region
    $region2: #{tpu_custom_call.1} parent=1 // pred_check
      _
    $region3: #{tpu_custom_call.1} parent=1 // pred_check_branch
      %16 = sbr.rel (0) target = $region5
    $region4: #{tpu_custom_call.1} parent=1 // pred_region
      %s18 = ssub.s32 256, 256
      %19 = vsyncadd [#allocation3], %s18
      %s20 = sshll.u32 [#allocation2], 4
      %s21 = int_to_ptr.vmem [resolvable:$true] %s20
      %26 = dma.hbm_to_vmem [thread:$0]  %s0, 256, %s21, [#allocation3], 128, 128, 8
    $region5: #{tpu_custom_call.1} parent=1 // pred_fallthru
      _
    // Predicated region
    $region6: #{tpu_custom_call.1} parent=1 // pred_check
      _
    $region7: #{tpu_custom_call.1} parent=1 // pred_check_branch
      %28 = sbr.rel (0) target = $region9
    $region8: #{tpu_custom_call.1} parent=1 // pred_region
      %s30 = ssub.s32 256, 256
      %31 = vsyncadd [#allocation6], %s30
      %s32 = sshll.u32 [#allocation5], 4
      %s33 = int_to_ptr.vmem [resolvable:$true] %s32
      %38 = dma.hbm_to_vmem [thread:$0]  %s1, 256, %s33, [#allocation6], 128, 128, 8
    $region9: #{tpu_custom_call.1} parent=1 // pred_fallthru
      _
    // Predicated region
    $region10: #{tpu_custom_call.1} parent=1 // pred_check
      _
    $region11: #{tpu_custom_call.1} parent=1 // pred_check_branch
      %40 = sbr.rel (0) target = $region13
    $region12: #{tpu_custom_call.1} parent=1 // pred_region
      %s42 = ssub.s32 256, 256
      %43 = vsyncadd [#allocation6], %s42
      %s44 = sshll.u32 [#allocation7], 4
      %s45 = int_to_ptr.vmem [resolvable:$true] %s44
      %50 = dma.hbm_to_vmem [thread:$0]  %s2, 256, %s45, [#allocation6], 128, 128, 8
    $region13: #{tpu_custom_call.1} parent=1 // pred_fallthru
      _
    // Predicated region
    $region14: #{tpu_custom_call.1} parent=1 // pred_check
      _
    $region15: #{tpu_custom_call.1} parent=1 // pred_check_branch
      %52 = sbr.rel (0) target = $region17
    $region16: #{tpu_custom_call.1} parent=1 // pred_region
      _
    $region17: #{tpu_custom_call.1} parent=1 // pred_fallthru
      _
    // Predicated region
    $region18: #{tpu_custom_call.1} parent=1 // pred_check
      _
    $region19: #{tpu_custom_call.1} parent=1 // pred_check_branch
      %54 = sbr.rel (0) target = $region21
    $region20: #{tpu_custom_call.1} parent=1 // pred_region
      %s56 = ssub.s32 2048, 2048
      %57 = vsyncadd [#allocation9], %s56
      %s58 = sshll.u32 [#allocation8], 4
      %s59 = int_to_ptr.vmem [resolvable:$true] %s58
      %64 = dma.hbm_to_vmem [thread:$0]  %s4, 2048, %s59, [#allocation9], 128, 128, 8
    $region21: #{tpu_custom_call.1} parent=1 // pred_fallthru
      _
    // Predicated region
    $region22: #{tpu_custom_call.1} parent=1 // pred_check
      _
    $region23: #{tpu_custom_call.1} parent=1 // pred_check_branch
      %66 = sbr.rel (0) target = $region25
    $region24: #{tpu_custom_call.1} parent=1 // pred_region
      _
    $region25: #{tpu_custom_call.1} parent=1 // pred_fallthru
      _
    // Predicated region
    $region26: #{tpu_custom_call.1} parent=1 // pred_check
      _
    $region27: #{tpu_custom_call.1} parent=1 // pred_check_branch
      %68 = sbr.rel (0) target = $region29
    $region28: #{tpu_custom_call.1} parent=1 // pred_region
      %69 = dma.done [#allocation3], 256
    $region29: #{tpu_custom_call.1} parent=1 // pred_fallthru
      _
    // Predicated region
    $region30: #{tpu_custom_call.1} parent=1 // pred_check
      _
    $region31: #{tpu_custom_call.1} parent=1 // pred_check_branch
      %71 = sbr.rel (0) target = $region33
    $region32: #{tpu_custom_call.1} parent=1 // pred_region
      %72 = dma.done [#allocation6], 256
    $region33: #{tpu_custom_call.1} parent=1 // pred_fallthru
      _
    // Predicated region
    $region34: #{tpu_custom_call.1} parent=1 // pred_check
      _
    $region35: #{tpu_custom_call.1} parent=1 // pred_check_branch
      %74 = sbr.rel (0) target = $region37
    $region36: #{tpu_custom_call.1} parent=1 // pred_region
      %75 = dma.done [#allocation6], 256
    $region37: #{tpu_custom_call.1} parent=1 // pred_fallthru
      _
    // Predicated region
    $region38: #{tpu_custom_call.1} parent=1 // pred_check
      _
    $region39: #{tpu_custom_call.1} parent=1 // pred_check_branch
      %77 = sbr.rel (0) target = $region41
    $region40: #{tpu_custom_call.1} parent=1 // pred_region
      %78 = dma.done [#allocation9], 2048
    $region41: #{tpu_custom_call.1} parent=1 // pred_fallthru
      _
    %v79 = vld [vmem:[#allocation2] sm:$0xff]
    %v80 = vld [vmem:[#allocation2 + $0x8] sm:$0xff]
    %v81 = vld [vmem:[#allocation5] sm:$0xff]
    %v82 = vld [vmem:[#allocation5 + $0x8] sm:$0xff]
    %vm83 = vcmask 130048
    %v85 = vsel %vm83, %v79, 0
    %v88 = vsel %vm83, %v80, 0
    %90 = vmatprep.subr.mxu0 0.0
    %91 = vmatpush1.msra.mxu0 0.0
    %92 = vmatprep.subr.mxu0 0.0
    %93 = vmatpush1.msra.mxu0 0.0
    %94 = vmatprep.subr.mxu0 0.0
    %95 = vmatpush1.msra.mxu0 0.0
    %96 = vmatprep.subr.mxu0 0.0
    %97 = vmatpush1.msra.mxu0 0.0
    %98 = vmatprep.subr.mxu0 0.0
    %99 = vmatpush1.msra.mxu0 0.0
    %100 = vmatprep.subr.mxu0 0.0
    %101 = vmatpush1.msra.mxu0 0.0
    %102 = vmatprep.subr.mxu0 0.0
    %103 = vmatpush1.msra.mxu0 0.0
    %104 = vmatprep.subr.mxu0 0.0
    %105 = vmatpush1.msra.mxu0 0.0
    %106 = vmatprep.subr.mxu0 0.0
    %107 = vmatpush1.msra.mxu0 0.0
    %108 = vmatprep.subr.mxu0 0.0
    %109 = vmatpush1.msra.mxu0 0.0
    %110 = vmatprep.subr.mxu0 0.0
    %111 = vmatpush1.msra.mxu0 0.0
    %112 = vmatprep.subr.mxu0 0.0
    %113 = vmatpush1.msra.mxu0 0.0
    %114 = vmatprep.subr.mxu0 0.0
    %115 = vmatpush1.msra.mxu0 0.0
    %116 = vmatprep.subr.mxu0 0.0
    %117 = vmatpush1.msra.mxu0 0.0
    %118 = vmatprep.subr.mxu0 0.0
    %119 = vmatpush1.msra.mxu0 %v82
    %120 = vmatprep.subr.mxu0 0.0
    %121 = vmatpush1.msra.mxu0 %v81
    %122 = vmatprep.subr.mxu0 0.0
    %123 = vmatpush2.msra.mxu0 0.0
    %124 = vmatprep.subr.mxu0 0.0
    %125 = vmatpush2.msra.mxu0 0.0
    %126 = vmatprep.subr.mxu0 0.0
    %127 = vmatpush2.msra.mxu0 0.0
    %128 = vmatprep.subr.mxu0 0.0
    %129 = vmatpush2.msra.mxu0 0.0
    %130 = vmatprep.subr.mxu0 0.0
    %131 = vmatpush2.msra.mxu0 0.0
    %132 = vmatprep.subr.mxu0 0.0
    %133 = vmatpush2.msra.mxu0 0.0
    %134 = vmatprep.subr.mxu0 0.0
    %135 = vmatpush2.msra.mxu0 0.0
    %136 = vmatprep.subr.mxu0 0.0
    %137 = vmatpush2.msra.mxu0 0.0
    %138 = vmatprep.subr.mxu0 0.0
    %139 = vmatpush2.msra.mxu0 0.0
    %140 = vmatprep.subr.mxu0 0.0
    %141 = vmatpush2.msra.mxu0 0.0
    %142 = vmatprep.subr.mxu0 0.0
    %143 = vmatpush2.msra.mxu0 0.0
    %144 = vmatprep.subr.mxu0 0.0
    %145 = vmatpush2.msra.mxu0 0.0
    %146 = vmatprep.subr.mxu0 0.0
    %147 = vmatpush2.msra.mxu0 0.0
    %148 = vmatprep.subr.mxu0 0.0
    %149 = vmatpush2.msra.mxu0 0.0
    %150 = vmatprep.subr.mxu0 0.0
    %151 = vmatpush2.msra.mxu0 0.0
    %152 = vmatprep.subr.mxu0 0.0
    %153 = vmatpush2.msra.mxu0 0.0
    %154 = vmatprep.mubr.f32.mxu0 0.0
    %155 = vmatmul.mubr.f32.gmra.mxu0 %v85
    %v156 = vpop.f32.mrf.mxu0
    %v157 = vadd.f32 0.0, %v156
    %v158 = vpop.f32.mrf.mxu0
    %159 = vmatprep.mubr.f32.mxu0 0.0
    %160 = vmatmul.mubr.f32.gmra.mxu0 %v88
    %v161 = vpop.f32.mrf.mxu0
    %v162 = vadd.f32 0.0, %v161
    %v163 = vpop.f32.mrf.mxu0
    %164 = vdwg.mxu0
    %v165 = vld [vmem:[#allocation7] sm:$0xff]
    %v166 = vld [vmem:[#allocation7 + $0x8] sm:$0xff]
    %v167 = vld [vmem:[%s3] sm:$0x1]
    %v169 = vlaneseq
    %v170 = vshrl.u32 %v169, 7
    %v171 = vsub.s32 0, %v170
    %v172 = vrot.slane %v167, %v171
    %v175 = vsel %vm83, %v157, 0
    %v178 = vsel %vm83, %v162, 0
    %180 = vmatprep.subr.mxu0 0.0
    %181 = vmatpush1.msra.mxu0 0.0
    %182 = vmatprep.subr.mxu0 0.0
    %183 = vmatpush1.msra.mxu0 0.0
    %184 = vmatprep.subr.mxu0 0.0
    %185 = vmatpush1.msra.mxu0 0.0
    %186 = vmatprep.subr.mxu0 0.0
    %187 = vmatpush1.msra.mxu0 0.0
    %188 = vmatprep.subr.mxu0 0.0
    %189 = vmatpush1.msra.mxu0 0.0
    %190 = vmatprep.subr.mxu0 0.0
    %191 = vmatpush1.msra.mxu0 0.0
    %192 = vmatprep.subr.mxu0 0.0
    %193 = vmatpush1.msra.mxu0 0.0
    %194 = vmatprep.subr.mxu0 0.0
    %195 = vmatpush1.msra.mxu0 0.0
    %196 = vmatprep.subr.mxu0 0.0
    %197 = vmatpush1.msra.mxu0 0.0
    %198 = vmatprep.subr.mxu0 0.0
    %199 = vmatpush1.msra.mxu0 0.0
    %200 = vmatprep.subr.mxu0 0.0
    %201 = vmatpush1.msra.mxu0 0.0
    %202 = vmatprep.subr.mxu0 0.0
    %203 = vmatpush1.msra.mxu0 0.0
    %204 = vmatprep.subr.mxu0 0.0
    %205 = vmatpush1.msra.mxu0 0.0
    %206 = vmatprep.subr.mxu0 0.0
    %207 = vmatpush1.msra.mxu0 0.0
    %208 = vmatprep.subr.mxu0 0.0
    %209 = vmatpush1.msra.mxu0 %v166
    %210 = vmatprep.subr.mxu0 0.0
    %211 = vmatpush1.msra.mxu0 %v165
    %212 = vmatprep.subr.mxu0 0.0
    %213 = vmatpush2.msra.mxu0 0.0
    %214 = vmatprep.subr.mxu0 0.0
    %215 = vmatpush2.msra.mxu0 0.0
    %216 = vmatprep.subr.mxu0 0.0
    %217 = vmatpush2.msra.mxu0 0.0
    %218 = vmatprep.subr.mxu0 0.0
    %219 = vmatpush2.msra.mxu0 0.0
    %220 = vmatprep.subr.mxu0 0.0
    %221 = vmatpush2.msra.mxu0 0.0
    %222 = vmatprep.subr.mxu0 0.0
    %223 = vmatpush2.msra.mxu0 0.0
    %224 = vmatprep.subr.mxu0 0.0
    %225 = vmatpush2.msra.mxu0 0.0
    %226 = vmatprep.subr.mxu0 0.0
    %227 = vmatpush2.msra.mxu0 0.0
    %228 = vmatprep.subr.mxu0 0.0
    %229 = vmatpush2.msra.mxu0 0.0
    %230 = vmatprep.subr.mxu0 0.0
    %231 = vmatpush2.msra.mxu0 0.0
    %232 = vmatprep.subr.mxu0 0.0
    %233 = vmatpush2.msra.mxu0 0.0
    %234 = vmatprep.subr.mxu0 0.0
    %235 = vmatpush2.msra.mxu0 0.0
    %236 = vmatprep.subr.mxu0 0.0
    %237 = vmatpush2.msra.mxu0 0.0
    %238 = vmatprep.subr.mxu0 0.0
    %239 = vmatpush2.msra.mxu0 0.0
    %240 = vmatprep.subr.mxu0 0.0
    %241 = vmatpush2.msra.mxu0 0.0
    %242 = vmatprep.subr.mxu0 0.0
    %243 = vmatpush2.msra.mxu0 0.0
    %244 = vmatprep.mubr.f32.mxu0 0.0
    %245 = vmatmul.mubr.f32.gmra.mxu0 %v175
    %v246 = vpop.f32.mrf.mxu0
    %v247 = vadd.f32 %v172, %v246
    %v248 = vpop.f32.mrf.mxu0
    %249 = vmatprep.mubr.f32.mxu0 0.0
    %250 = vmatmul.mubr.f32.gmra.mxu0 %v178
    %v251 = vpop.f32.mrf.mxu0
    %v252 = vadd.f32 %v172, %v251
    %v253 = vpop.f32.mrf.mxu0
    %254 = vdwg.mxu0
    %v255 = vmax.f32 %v247, 0.0
    %v256 = vmax.f32 %v252, 0.0
    %257 = vmatprep.subr.mxu0 0.0
    %258 = vmatpush1.msra.mxu0 0.0
    %259 = vmatprep.subr.mxu0 0.0
    %260 = vmatpush1.msra.mxu0 0.0
    %261 = vmatprep.subr.mxu0 0.0
    %262 = vmatpush1.msra.mxu0 0.0
    %263 = vmatprep.subr.mxu0 0.0
    %264 = vmatpush1.msra.mxu0 0.0
    %265 = vmatprep.subr.mxu0 0.0
    %266 = vmatpush1.msra.mxu0 0.0
    %267 = vmatprep.subr.mxu0 0.0
    %268 = vmatpush1.msra.mxu0 0.0
    %269 = vmatprep.subr.mxu0 0.0
    %270 = vmatpush1.msra.mxu0 0.0
    %271 = vmatprep.subr.mxu0 0.0
    %272 = vmatpush1.msra.mxu0 0.0
    %273 = vmatprep.subr.mxu0 0.0
    %274 = vmatpush1.msra.mxu0 0.0
    %275 = vmatprep.subr.mxu0 0.0
    %276 = vmatpush1.msra.mxu0 0.0
    %277 = vmatprep.subr.mxu0 0.0
    %278 = vmatpush1.msra.mxu0 0.0
    %279 = vmatprep.subr.mxu0 0.0
    %280 = vmatpush1.msra.mxu0 0.0
    %281 = vmatprep.subr.mxu0 0.0
    %282 = vmatpush1.msra.mxu0 0.0
    %283 = vmatprep.subr.mxu0 0.0
    %284 = vmatpush1.msra.mxu0 0.0
    %285 = vmatprep.subr.mxu0 0.0
    %286 = vmatpush1.msra.mxu0 %v256
    %287 = vmatprep.subr.mxu0 0.0
    %288 = vmatpush1.msra.mxu0 %v255
    %289 = vmatprep.subr.mxu0 0.0
    %290 = vmatpush2.msra.mxu0 0.0
    %291 = vmatprep.subr.mxu0 0.0
    %292 = vmatpush2.msra.mxu0 0.0
    %293 = vmatprep.subr.mxu0 0.0
    %294 = vmatpush2.msra.mxu0 0.0
    %295 = vmatprep.subr.mxu0 0.0
    %296 = vmatpush2.msra.mxu0 0.0
    %297 = vmatprep.subr.mxu0 0.0
    %298 = vmatpush2.msra.mxu0 0.0
    %299 = vmatprep.subr.mxu0 0.0
    %300 = vmatpush2.msra.mxu0 0.0
    %301 = vmatprep.subr.mxu0 0.0
    %302 = vmatpush2.msra.mxu0 0.0
    %303 = vmatprep.subr.mxu0 0.0
    %304 = vmatpush2.msra.mxu0 0.0
    %305 = vmatprep.subr.mxu0 0.0
    %306 = vmatpush2.msra.mxu0 0.0
    %307 = vmatprep.subr.mxu0 0.0
    %308 = vmatpush2.msra.mxu0 0.0
    %309 = vmatprep.subr.mxu0 0.0
    %310 = vmatpush2.msra.mxu0 0.0
    %311 = vmatprep.subr.mxu0 0.0
    %312 = vmatpush2.msra.mxu0 0.0
    %313 = vmatprep.subr.mxu0 0.0
    %314 = vmatpush2.msra.mxu0 0.0
    %315 = vmatprep.subr.mxu0 0.0
    %316 = vmatpush2.msra.mxu0 0.0
    %317 = vmatprep.subr.mxu0 0.0
    %318 = vmatpush2.msra.mxu0 0.0
    %319 = vmatprep.subr.mxu0 0.0
    %320 = vmatpush2.msra.mxu0 0.0
    %321 = vmatprep.mubr.f32.mxu0 0.0
    %322 = vmatmul.mubr.f32.gmra.mxu0 %v85
    %v323 = vpop.f32.mrf.mxu0
    %v324 = vadd.f32 0.0, %v323
    %v325 = vpop.f32.mrf.mxu0
    %326 = vmatprep.mubr.f32.mxu0 0.0
    %327 = vmatmul.mubr.f32.gmra.mxu0 %v88
    %v328 = vpop.f32.mrf.mxu0
    %v329 = vadd.f32 0.0, %v328
    %v330 = vpop.f32.mrf.mxu0
    %331 = vdwg.mxu0
    %v332 = vld [vmem:[#allocation8] sm:$0xff]
    %v333 = vld [vmem:[#allocation8 + $0x8] sm:$0xff]
    %v334 = vld [vmem:[#allocation8 + $0x10] sm:$0xff]
    %v335 = vld [vmem:[#allocation8 + $0x18] sm:$0xff]
    %v336 = vld [vmem:[#allocation8 + $0x20] sm:$0xff]
    %v337 = vld [vmem:[#allocation8 + $0x28] sm:$0xff]
    %v338 = vld [vmem:[#allocation8 + $0x30] sm:$0xff]
    %v339 = vld [vmem:[#allocation8 + $0x38] sm:$0xff]
    %v340 = vld [vmem:[#allocation8 + $0x40] sm:$0xff]
    %v341 = vld [vmem:[#allocation8 + $0x48] sm:$0xff]
    %v342 = vld [vmem:[#allocation8 + $0x50] sm:$0xff]
    %v343 = vld [vmem:[#allocation8 + $0x58] sm:$0xff]
    %v344 = vld [vmem:[#allocation8 + $0x60] sm:$0xff]
    %v345 = vld [vmem:[#allocation8 + $0x68] sm:$0xff]
    %v346 = vld [vmem:[#allocation8 + $0x70] sm:$0xff]
    %v347 = vld [vmem:[#allocation8 + $0x78] sm:$0xff]
    %v348 = vld [vmem:[%s5] sm:$0x1]
    %v350 = vlaneseq
    %v351 = vshrl.u32 %v350, 7
    %v352 = vsub.s32 0, %v351
    %v353 = vrot.slane %v348, %v352
    %355 = vmatprep.subr.mxu0 0.0
    %356 = vmatpush1.msra.mxu0 %v347
    %357 = vmatprep.subr.mxu0 0.0
    %358 = vmatpush1.msra.mxu0 %v346
    %359 = vmatprep.subr.mxu0 0.0
    %360 = vmatpush1.msra.mxu0 %v345
    %361 = vmatprep.subr.mxu0 0.0
    %362 = vmatpush1.msra.mxu0 %v344
    %363 = vmatprep.subr.mxu0 0.0
    %364 = vmatpush1.msra.mxu0 %v343
    %365 = vmatprep.subr.mxu0 0.0
    %366 = vmatpush1.msra.mxu0 %v342
    %367 = vmatprep.subr.mxu0 0.0
    %368 = vmatpush1.msra.mxu0 %v341
    %369 = vmatprep.subr.mxu0 0.0
    %370 = vmatpush1.msra.mxu0 %v340
    %371 = vmatprep.subr.mxu0 0.0
    %372 = vmatpush1.msra.mxu0 %v339
    %373 = vmatprep.subr.mxu0 0.0
    %374 = vmatpush1.msra.mxu0 %v338
    %375 = vmatprep.subr.mxu0 0.0
    %376 = vmatpush1.msra.mxu0 %v337
    %377 = vmatprep.subr.mxu0 0.0
    %378 = vmatpush1.msra.mxu0 %v336
    %379 = vmatprep.subr.mxu0 0.0
    %380 = vmatpush1.msra.mxu0 %v335
    %381 = vmatprep.subr.mxu0 0.0
    %382 = vmatpush1.msra.mxu0 %v334
    %383 = vmatprep.subr.mxu0 0.0
    %384 = vmatpush1.msra.mxu0 %v333
    %385 = vmatprep.subr.mxu0 0.0
    %386 = vmatpush1.msra.mxu0 %v332
    %387 = vmatprep.subr.mxu0 0.0
    %388 = vmatpush2.msra.mxu0 0.0
    %389 = vmatprep.subr.mxu0 0.0
    %390 = vmatpush2.msra.mxu0 0.0
    %391 = vmatprep.subr.mxu0 0.0
    %392 = vmatpush2.msra.mxu0 0.0
    %393 = vmatprep.subr.mxu0 0.0
    %394 = vmatpush2.msra.mxu0 0.0
    %395 = vmatprep.subr.mxu0 0.0
    %396 = vmatpush2.msra.mxu0 0.0
    %397 = vmatprep.subr.mxu0 0.0
    %398 = vmatpush2.msra.mxu0 0.0
    %399 = vmatprep.subr.mxu0 0.0
    %400 = vmatpush2.msra.mxu0 0.0
    %401 = vmatprep.subr.mxu0 0.0
    %402 = vmatpush2.msra.mxu0 0.0
    %403 = vmatprep.subr.mxu0 0.0
    %404 = vmatpush2.msra.mxu0 0.0
    %405 = vmatprep.subr.mxu0 0.0
    %406 = vmatpush2.msra.mxu0 0.0
    %407 = vmatprep.subr.mxu0 0.0
    %408 = vmatpush2.msra.mxu0 0.0
    %409 = vmatprep.subr.mxu0 0.0
    %410 = vmatpush2.msra.mxu0 0.0
    %411 = vmatprep.subr.mxu0 0.0
    %412 = vmatpush2.msra.mxu0 0.0
    %413 = vmatprep.subr.mxu0 0.0
    %414 = vmatpush2.msra.mxu0 0.0
    %415 = vmatprep.subr.mxu0 0.0
    %416 = vmatpush2.msra.mxu0 0.0
    %417 = vmatprep.subr.mxu0 0.0
    %418 = vmatpush2.msra.mxu0 0.0
    %419 = vmatprep.mubr.f32.mxu0 0.0
    %420 = vmatmul.mubr.f32.gmra.mxu0 %v324
    %v421 = vpop.f32.mrf.mxu0
    %v422 = vadd.f32 %v353, %v421
    %v423 = vpop.f32.mrf.mxu0
    %424 = vmatprep.mubr.f32.mxu0 0.0
    %425 = vmatmul.mubr.f32.gmra.mxu0 %v329
    %v426 = vpop.f32.mrf.mxu0
    %v427 = vadd.f32 %v353, %v426
    %v428 = vpop.f32.mrf.mxu0
    %429 = vdwg.mxu0
    %430 = vst [vmem:[#allocation10] sm:$0xff] %v422
    %431 = vst [vmem:[#allocation10 + $0x8] sm:$0xff] %v427
    // Predicated region
    $region42: #{tpu_custom_call.1} parent=1 // pred_check
      _
    $region43: #{tpu_custom_call.1} parent=1 // pred_check_branch
      %433 = sbr.rel (0) target = $region45
    $region44: #{tpu_custom_call.1} parent=1 // pred_region
      %s435 = ssub.s32 256, 256
      %436 = vsyncadd [#allocation4], %s435
      %s437 = sshll.u32 [#allocation10], 4
      %s438 = int_to_ptr.vmem [resolvable:$true] %s437
      %443 = dma.vmem_to_hbm [thread:$0]  %s438, 256, %s6, [#allocation4], 128, 128, 8
    $region45: #{tpu_custom_call.1} parent=1 // pred_fallthru
      _
    // Predicated region
    $region46: #{tpu_custom_call.1} parent=1 // pred_check
      _
    $region47: #{tpu_custom_call.1} parent=1 // pred_check_branch
      %445 = sbr.rel (0) target = $region49
    $region48: #{tpu_custom_call.1} parent=1 // pred_region
      %446 = dma.done [#allocation4], 256
    $region49: #{tpu_custom_call.1} parent=1 // pred_fallthru
      _
    %447 = vsyncpa [#allocation3], 1
    %448 = vsyncpa [#allocation6], 1
    %449 = vsyncpa [#allocation9], 1
    %450 = vsyncpa [#allocation4], 1

</llo_original>
